<compile_context>
chip_gen: v6e
topology: v6e:2x2x1
jax: 0.10.0
libtpu: 0.0.40
codegen_flags: <defaults>
</compile_context>

<pallas_src>
import jax
import jax.numpy as jnp
from jax.experimental import pallas as pl
from jax.experimental.pallas import tpu as pltpu

SPLIT = 32  # aten.split size along dim 1


def _split_cat_singular_kernel(x_ref, z_ref, o_ref):
    # getitem = cat([x, y], 1)[:, :SPLIT] == x[:, :SPLIT] (asserted in wrapper).
    g = x_ref[:, :SPLIT]  # single VMEM load, reused for both duplicated pieces
    # out tile = cat([g, g, z], 1) written in one lane-dense store.
    o_ref[...] = jnp.concatenate([g, g, z_ref[...]], axis=1)


def _pick_row_tile(batch: int, row_bytes: int) -> int:
    """Rows per grid step: big enough to amortize the ~0.35us/step overhead,
    small enough that the double-buffered footprint stays ~12 MiB (safe on
    v5e's 16 MiB scoped default and v7x's 64 MiB physical VMEM)."""
    budget = 12 * 1024 * 1024
    tb = budget // max(1, 2 * row_bytes)
    tb = max(8, min(1024, tb))
    tb = (tb // 8) * 8  # sublane-aligned second-minor block dim
    return batch if batch <= tb else tb


def split_cat_singular(x: jax.Array, y: jax.Array, z: jax.Array) -> jax.Array:
    """Mirrors TestSplitCatSingular.forward(x, y, z)."""
    B, Dx = x.shape
    Bz, Dz = z.shape
    assert B == y.shape[0] == Bz, (x.shape, y.shape, z.shape)
    assert x.dtype == y.dtype == z.dtype, (x.dtype, y.dtype, z.dtype)
    # split[0] must come entirely out of x so that y is dead w.r.t. the output.
    assert Dx >= SPLIT, "x must provide the full first split chunk"
    del y  # never read: it only contributes to the discarded split pieces

    out_d = 2 * SPLIT + Dz
    itemsize = jnp.dtype(x.dtype).itemsize

    # DMA only x's used columns when that block shape is legal (Dx == SPLIT);
    # otherwise the full width is staged and sliced in-kernel.
    x_cols = SPLIT if Dx == SPLIT else Dx

    row_bytes = (x_cols + Dz + out_d) * itemsize
    tb = _pick_row_tile(B, row_bytes)
    grid = (pl.cdiv(B, tb),)

    # Actual HBM traffic of the chosen blocks (advisory for XLA's scheduler).
    bytes_accessed = (B * x_cols + B * Dz + B * out_d) * itemsize

    return pl.pallas_call(
        _split_cat_singular_kernel,
        out_shape=jax.ShapeDtypeStruct((B, out_d), x.dtype),
        grid=grid,
        in_specs=[
            pl.BlockSpec((tb, x_cols), lambda i: (i, 0)),
            pl.BlockSpec((tb, Dz), lambda i: (i, 0)),
        ],
        out_specs=pl.BlockSpec((tb, out_d), lambda i: (i, 0)),
        compiler_params=pltpu.CompilerParams(
            dimension_semantics=("parallel",),
        ),
        cost_estimate=pl.CostEstimate(
            flops=0, transcendentals=0, bytes_accessed=bytes_accessed
        ),
    )(x, z)


def _reference(x: jax.Array, y: jax.Array, z: jax.Array) -> jax.Array:
    # Pure-JAX mirror of the aten graph.
    cat = jnp.concatenate([x, y], axis=1)
    getitem = cat[:, :SPLIT]                       # split(cat, 32, 1)[0]
    cat_1 = jnp.concatenate([getitem], axis=1)
    cat_2 = jnp.concatenate([getitem, z], axis=1)
    return jnp.concatenate([cat_1, cat_2], axis=1)


if __name__ == "__main__":
    key = jax.random.PRNGKey(0)
    kx, ky, kz = jax.random.split(key, 3)
    # Small shapes consistent with the module: split size 32 along dim 1,
    # z width chosen so the packed output is exactly 128 lanes wide.
    x = jax.random.normal(kx, (8, 32), dtype=jnp.float32)
    y = jax.random.normal(ky, (8, 32), dtype=jnp.float32)
    z = jax.random.normal(kz, (8, 64), dtype=jnp.float32)

    out = jax.block_until_ready(split_cat_singular(x, y, z))

    ref = _reference(x, y, z)
    assert out.shape == (8, 128), out.shape
    assert jnp.array_equal(out, ref), "mismatch vs reference"
    print("KERNEL_OK")
</pallas_src>

<mosaic_0001>
module attributes {stable_mosaic.version = 11 : i64} {
  func.func @_split_cat_singular_kernel(%arg0: i32, %arg1: memref<8x32xf32, #tpu.memory_space<vmem>>, %arg2: memref<8x64xf32, #tpu.memory_space<vmem>>, %arg3: memref<8x128xf32, #tpu.memory_space<vmem>>) attributes {dimension_semantics = [#tpu.dimension_semantics<parallel>], iteration_bounds = array<i64: 1>, scalar_prefetch = 0 : i64, scratch_operands = 0 : i64, tpu.core_type = #tpu.core_type<tc>, window_params = [{transform_indices = @transform_0, window_bounds = array<i64: 8, 32>}, {transform_indices = @transform_1, window_bounds = array<i64: 8, 64>}, {transform_indices = @transform_2, window_bounds = array<i64: 8, 128>}]} {
    %c0 = arith.constant 0 : index
    %c0_0 = arith.constant 0 : index
    %0 = vector.load %arg1[%c0, %c0_0] : memref<8x32xf32, #tpu.memory_space<vmem>>, vector<8x32xf32>
    %c0_1 = arith.constant 0 : index
    %c0_2 = arith.constant 0 : index
    %1 = vector.load %arg2[%c0_1, %c0_2] : memref<8x64xf32, #tpu.memory_space<vmem>>, vector<8x64xf32>
    %2 = tpu.concatenate %0, %0, %1 in 1 : vector<8x32xf32>, vector<8x32xf32>, vector<8x64xf32> -> vector<8x128xf32>
    %c0_3 = arith.constant 0 : index
    %c0_4 = arith.constant 0 : index
    %3 = vector.load %arg3[%c0_3, %c0_4] : memref<8x128xf32, #tpu.memory_space<vmem>>, vector<8x128xf32>
    tpu.vector_store %arg3[%c0_3, %c0_4], %2 {strides = array<i32>} : memref<8x128xf32, #tpu.memory_space<vmem>>, vector<8x128xf32>,
    return
  }
  func.func @transform_0(%arg0: i32) -> (i32, i32) {
    %c0_i32 = arith.constant 0 : i32
    %c0_i32_0 = arith.constant 0 : i32
    return %arg0, %c0_i32 : i32, i32
  }
  func.func @transform_1(%arg0: i32) -> (i32, i32) {
    %c0_i32 = arith.constant 0 : i32
    %c0_i32_0 = arith.constant 0 : i32
    return %arg0, %c0_i32 : i32, i32
  }
  func.func @transform_2(%arg0: i32) -> (i32, i32) {
    %c0_i32 = arith.constant 0 : i32
    %c0_i32_0 = arith.constant 0 : i32
    return %arg0, %c0_i32 : i32, i32
  }
}

</mosaic_0001>

<llo_original>
// kernel: tpu_custom_call.1
$region0: #{tpu_custom_call.1}
  #allocation0 [shape = 'u32[]', space=smem, size = 0x4, offset = 0x4, fixed_abs, tag = 'smem constant byte address 0x4 - core index']
  #allocation1 [shape = 'u32[144,128]{1,0:T(1,128)}', space=vmem, size = 0x12000, scoped, tag = 'internal scratch']
  %s0 = inlined_call_operand.hbm [shape: f32[8,32], index: 0, kind: input, shape index: {}]
  %s1 = inlined_call_operand.hbm [shape: f32[8,64], index: 1, kind: input, shape index: {}]
  %s2 = inlined_call_operand.hbm [shape: f32[8,128], index: 2, kind: output, shape index: {}]
  %s3 = sld [smem:[#allocation0]]
  $region26: #{tpu_custom_call.1} parent=0
    _
  %s5 = ssub.s32 1, %s3
  %s6 = scalar_select 0, %s5, %s3
  $region1: #{tpu_custom_call.1} parent=0
    #allocation2 [shape = 'u8[4096]{0}', space=vmem, size = 0x1000, scoped, tag = 'input window, operand 0, single buffered']
    #allocation3 [shape = 's32[1]{0}', space=sflag, size = 0x4, scoped, tag = 'scoped memory for tpu_custom_call.1']
    #allocation4 [shape = 's32[1]{0}', space=sflag, size = 0x4, scoped, tag = 'scoped memory for tpu_custom_call.1']
    #allocation5 [shape = 'u8[4096]{0}', space=vmem, size = 0x1000, scoped, tag = 'input window, operand 1, single buffered']
    #allocation6 [shape = 's32[1]{0}', space=sflag, size = 0x4, scoped, tag = 'scoped memory for tpu_custom_call.1']
    #allocation7 [shape = 'u8[4096]{0}', space=vmem, size = 0x1000, scoped, tag = 'output window, operand 0, single buffered']
    %7 = vsyncpa [#allocation3], 0
    %8 = vsyncpa [#allocation6], 0
    %9 = vsyncpa [#allocation4], 0
    // Predicated region
    $region2: #{tpu_custom_call.1} parent=1 // pred_check
      _
    $region3: #{tpu_custom_call.1} parent=1 // pred_check_branch
      %11 = sbr.rel (0) target = $region5
    $region4: #{tpu_custom_call.1} parent=1 // pred_region
      %s13 = ssub.s32 128, 128
      %14 = vsyncadd [#allocation3], %s13
      %s16 = sshll.u32 [#allocation2], 4
      %s17 = int_to_ptr.vmem [resolvable:$true] %s16
      %19 = dma.hbm_to_vmem [thread:$0]  %s0, 128, %s17, [#allocation3]
    $region5: #{tpu_custom_call.1} parent=1 // pred_fallthru
      _
    // Predicated region
    $region6: #{tpu_custom_call.1} parent=1 // pred_check
      _
    $region7: #{tpu_custom_call.1} parent=1 // pred_check_branch
      %21 = sbr.rel (0) target = $region9
    $region8: #{tpu_custom_call.1} parent=1 // pred_region
      %s23 = ssub.s32 128, 128
      %24 = vsyncadd [#allocation6], %s23
      %s26 = sshll.u32 [#allocation5], 4
      %s27 = int_to_ptr.vmem [resolvable:$true] %s26
      %29 = dma.hbm_to_vmem [thread:$0]  %s1, 128, %s27, [#allocation6]
    $region9: #{tpu_custom_call.1} parent=1 // pred_fallthru
      _
    // Predicated region
    $region10: #{tpu_custom_call.1} parent=1 // pred_check
      _
    $region11: #{tpu_custom_call.1} parent=1 // pred_check_branch
      %31 = sbr.rel (0) target = $region13
    $region12: #{tpu_custom_call.1} parent=1 // pred_region
      %32 = dma.done [#allocation3], 128
    $region13: #{tpu_custom_call.1} parent=1 // pred_fallthru
      _
    // Predicated region
    $region14: #{tpu_custom_call.1} parent=1 // pred_check
      _
    $region15: #{tpu_custom_call.1} parent=1 // pred_check_branch
      %34 = sbr.rel (0) target = $region17
    $region16: #{tpu_custom_call.1} parent=1 // pred_region
      %35 = dma.done [#allocation6], 128
    $region17: #{tpu_custom_call.1} parent=1 // pred_fallthru
      _
    %v36 = vld [vmem:[#allocation2] sm:$0xff]
    %v37 = vld [vmem:[#allocation5] sm:$0xff]
    %39 = vrot.lane.b32.xlu0 %v36, 32
    %v40 = vpop.permute.xlu0 %39
    %43 = vrot.lane.b32.xlu0 %v37, 64
    %v44 = vpop.permute.xlu0 %43
    %vm46 = vcmask 261120
    %v47 = vsel %vm46, %v36, %v40
    %vm48 = vcmask 523264
    %v49 = vsel %vm48, %v47, %v44
    %50 = vst [vmem:[#allocation7] sm:$0xff] %v49
    // Predicated region
    $region18: #{tpu_custom_call.1} parent=1 // pred_check
      _
    $region19: #{tpu_custom_call.1} parent=1 // pred_check_branch
      %52 = sbr.rel (0) target = $region21
    $region20: #{tpu_custom_call.1} parent=1 // pred_region
      %s54 = ssub.s32 128, 128
      %55 = vsyncadd [#allocation4], %s54
      %s57 = sshll.u32 [#allocation7], 4
      %s58 = int_to_ptr.vmem [resolvable:$true] %s57
      %60 = dma.vmem_to_hbm [thread:$0]  %s58, 128, %s2, [#allocation4]
    $region21: #{tpu_custom_call.1} parent=1 // pred_fallthru
      _
    // Predicated region
    $region22: #{tpu_custom_call.1} parent=1 // pred_check
      _
    $region23: #{tpu_custom_call.1} parent=1 // pred_check_branch
      %62 = sbr.rel (0) target = $region25
    $region24: #{tpu_custom_call.1} parent=1 // pred_region
      %63 = dma.done [#allocation4], 128
    $region25: #{tpu_custom_call.1} parent=1 // pred_fallthru
      _
    %64 = vsyncpa [#allocation3], 1
    %65 = vsyncpa [#allocation6], 1
    %66 = vsyncpa [#allocation4], 1

</llo_original>
